<compile_context>
chip_gen: v5e
topology: v5e:2x2
jax: 0.10.0
libtpu: 0.0.40
codegen_flags: <defaults>
</compile_context>

<pallas_src>
import functools

import jax
import jax.numpy as jnp
from jax import lax
from jax.experimental import pallas as pl
from jax.experimental.pallas import tpu as pltpu

_SQRT_HALF = 0.7071067811865476  # float32 sqrt(0.5), matches the module buffer


def _conv1d_glu_kernel(x_ref, wa_ref, wb_ref, wdw_ref, bias_ref, g_ref, o_ref,
                       *, kernel_size: int, padding: int,
                       num_channel_tiles: int):
    """One (batch, output-channel-tile) step of the fused Conv1dGLU forward.

    Ref shapes (TC = channel tile, D = d_model, K = kernel_size, T = seq len):
      x_ref:    (T, D)    full input-channel slab (pointwise mixes channels)
      wa_ref:   (D, TC)   pointwise weights, `a` half (input-major)
      wb_ref:   (D, TC)   pointwise weights, `b` (gate) half
      wdw_ref:  (2K, TC)  depthwise taps: rows [0,K) = a-half, [K,2K) = b-half
      bias_ref: (4, TC)   rows: pw_a, pw_b, dw_a, dw_b biases
      g_ref:    (1, TC)   softsign(embedding_proj(embeddings)) for this batch
      o_ref:    (T, TC)   fused module output tile
    """
    T = x_ref.shape[0]
    TC = o_ref.shape[-1]
    K = kernel_size
    pad = padding

    # Single load of the input tile; everything below works on this value.
    x = x_ref[...].astype(jnp.float32)                                 # (T, D)

    # ---- pointwise (1x1) conv == channel matmul on the MXU, bias folded in.
    pw_a = jnp.dot(x, wa_ref[...].astype(jnp.float32),
                   preferred_element_type=jnp.float32)
    pw_a = pw_a + bias_ref[0:1, :].astype(jnp.float32)                 # (T, TC)
    pw_b = jnp.dot(x, wb_ref[...].astype(jnp.float32),
                   preferred_element_type=jnp.float32)
    pw_b = pw_b + bias_ref[1:2, :].astype(jnp.float32)                 # (T, TC)

    # ---- depthwise conv over time (sublane axis). Zero padding is fused:
    # each tap is one XLU roll (shifted view of the in-register value) plus a
    # masked multiply-add on the VPU.  No wrapper jnp.pad, no per-tap reloads.
    row = lax.broadcasted_iota(jnp.int32, (T, TC), 0)
    taps = wdw_ref[...].astype(jnp.float32)                            # (2K, TC)

    def depthwise(pw, tap_row0, bias_row):
        # Accumulator initialised with the depthwise bias (broadcasts on add).
        acc = bias_ref[bias_row:bias_row + 1, :].astype(jnp.float32)   # (1, TC)
        for k in range(K):
            # output[t] needs pw[t + k - pad]  => roll by shift = pad - k
            shift = pad - k
            wk = taps[tap_row0 + k:tap_row0 + k + 1, :]                # (1, TC)
            if shift == 0:
                acc = acc + pw * wk
            else:
                shifted = pltpu.roll(pw, shift % T, axis=0)
                # valid iff source index t + k - pad lies inside [0, T):
                # masks both the wrapped rows and the zero-padding region.
                valid = (row >= shift) & (row < T + shift)
                acc = acc + jnp.where(valid, shifted, 0.0) * wk
        return acc                                                     # (T, TC)

    a = depthwise(pw_a, 0, 2)
    b = depthwise(pw_b, K, 3)

    # ---- fused GLU epilogue: softsign shift, sigmoid gate (EUP exp),
    # residual add and sqrt(0.5) scale, then a single lane-dense store.
    g = g_ref[...].astype(jnp.float32)                                 # (1, TC)
    gate = 1.0 / (1.0 + jnp.exp(-b))                                   # sigmoid
    if num_channel_tiles == 1:
        res = x                                    # TC == D: residual == input
    else:
        c0 = pl.multiple_of(pl.program_id(1) * TC, TC)
        res = x_ref[:, pl.ds(c0, TC)].astype(jnp.float32)
    out = ((a + g) * gate + res) * _SQRT_HALF
    o_ref[...] = out.astype(o_ref.dtype)


def _channel_tile(d_model: int) -> int:
    """Output-channel tile: multiples of 128 lanes when possible, else full."""
    if d_model % 128 == 0:
        for tc in (512, 256, 128):
            if d_model % tc == 0:
                return tc
    return d_model


def conv1d_glu(x, embeddings, params, *, kernel_size: int, padding: int):
    """Fused forward of Conv1dGLU.

    Args:
      x:          (B, T, d_model) float32  (module input, before its permute)
      embeddings: (B, embedding_dim) float32
      params:
        w_pw (2D, D, 1), b_pw (2D,)   pointwise Conv1d
        w_dw (2D, 1, K), b_dw (2D,)   depthwise Conv1d (groups = 2D)
        w_emb (D, E),    b_emb (D,)   embedding_proj Linear
    Returns:
      (B, T, d_model) float32
    """
    B, T, D = x.shape
    K = kernel_size
    assert 2 * padding == K - 1, "residual add requires 'same' depthwise conv"
    assert params["w_pw"].shape == (2 * D, D, 1)
    assert params["w_dw"].shape == (2 * D, 1, K)

    # ---- tiny one-time parameter re-pack + embedding projection (plain JAX,
    # negligible vs. the (B, T, C) activation traffic the kernel handles).
    w_pw = params["w_pw"][:, :, 0]                         # (2D, D)
    wa = jnp.transpose(w_pw[:D])                           # (D, D) in x out (a)
    wb = jnp.transpose(w_pw[D:])                           # (D, D) gate half
    w_dw = params["w_dw"][:, 0, :]                         # (2D, K)
    wdw = jnp.concatenate([jnp.transpose(w_dw[:D]),        # (K, D) a-half taps
                           jnp.transpose(w_dw[D:])],       # (K, D) b-half taps
                          axis=0)                          # (2K, D)
    biases = jnp.stack([params["b_pw"][:D], params["b_pw"][D:],
                        params["b_dw"][:D], params["b_dw"][D:]], axis=0)  # (4, D)

    e = embeddings @ params["w_emb"].T + params["b_emb"]   # (B, D)
    g = (e / (1.0 + jnp.abs(e))).reshape(B, 1, D)          # softsign, (B, 1, D)

    tc = _channel_tile(D)
    n_c = D // tc

    kernel = functools.partial(_conv1d_glu_kernel, kernel_size=K,
                               padding=padding, num_channel_tiles=n_c)

    out = pl.pallas_call(
        kernel,
        out_shape=jax.ShapeDtypeStruct((B, T, D), x.dtype),
        grid_spec=pltpu.PrefetchScalarGridSpec(
            num_scalar_prefetch=0,
            grid=(B, n_c),
            in_specs=[
                # x: full input-channel slab; index_map independent of the
                # channel-tile axis so the resident block is re-used (no
                # re-fetch) while sweeping channel tiles within a batch.
                pl.BlockSpec((None, T, D), lambda b, c: (b, 0, 0)),
                pl.BlockSpec((D, tc), lambda b, c: (0, c)),          # wa
                pl.BlockSpec((D, tc), lambda b, c: (0, c)),          # wb
                pl.BlockSpec((2 * K, tc), lambda b, c: (0, c)),      # dw taps
                pl.BlockSpec((4, tc), lambda b, c: (0, c)),          # biases
                pl.BlockSpec((None, 1, tc), lambda b, c: (b, 0, c)),  # softsign
            ],
            out_specs=pl.BlockSpec((None, T, tc), lambda b, c: (b, 0, c)),
        ),
        compiler_params=pltpu.CompilerParams(
            dimension_semantics=("parallel", "parallel"),
            vmem_limit_bytes=32 * 1024 * 1024,
        ),
    )(x, wa, wb, wdw, biases, g)
    return out


def _reference_conv1d_glu(x, embeddings, params, *, kernel_size, padding):
    """Pure-JAX reference mirroring the PyTorch Conv1dGLU.forward."""
    B, T, D = x.shape
    xt = jnp.transpose(x, (0, 2, 1))                       # (B, D, T)
    residual = xt
    h = lax.conv_general_dilated(
        xt, params["w_pw"], window_strides=(1,), padding=[(0, 0)],
        dimension_numbers=("NCH", "OIH", "NCH")) + params["b_pw"][None, :, None]
    h = lax.conv_general_dilated(
        h, params["w_dw"], window_strides=(1,), padding=[(padding, padding)],
        dimension_numbers=("NCH", "OIH", "NCH"),
        feature_group_count=2 * D) + params["b_dw"][None, :, None]
    a, b = h[:, :D, :], h[:, D:, :]
    e = embeddings @ params["w_emb"].T + params["b_emb"]   # (B, D)
    soft = e / (1.0 + jnp.abs(e))                          # softsign
    a = a + soft[:, :, None]
    out = (a * jax.nn.sigmoid(b) + residual) * jnp.float32(_SQRT_HALF)
    return jnp.transpose(out, (0, 2, 1))                   # (B, T, D)


if __name__ == "__main__":
    B, T = 2, 16
    d_model, kernel_size, padding, embedding_dim = 4, 3, 1, 8
    D2 = 2 * d_model

    key = jax.random.PRNGKey(0)
    keys = jax.random.split(key, 8)

    x = jax.random.normal(keys[0], (B, T, d_model), dtype=jnp.float32)
    embeddings = jax.random.normal(keys[1], (B, embedding_dim), dtype=jnp.float32)

    def uinit(k, shape, fan_in):
        bound = 1.0 / jnp.sqrt(jnp.float32(fan_in))
        return jax.random.uniform(k, shape, minval=-bound, maxval=bound,
                                  dtype=jnp.float32)

    params = {
        "w_pw": uinit(keys[2], (D2, d_model, 1), d_model),
        "b_pw": uinit(keys[3], (D2,), d_model),
        "w_dw": uinit(keys[4], (D2, 1, kernel_size), kernel_size),
        "b_dw": uinit(keys[5], (D2,), kernel_size),
        "w_emb": uinit(keys[6], (d_model, embedding_dim), embedding_dim),
        "b_emb": uinit(keys[7], (d_model,), embedding_dim),
    }

    out = conv1d_glu(x, embeddings, params,
                     kernel_size=kernel_size, padding=padding)
    jax.block_until_ready(out)

    ref = _reference_conv1d_glu(x, embeddings, params,
                                kernel_size=kernel_size, padding=padding)
    assert out.shape == ref.shape, (out.shape, ref.shape)
    # MXU matmuls may round f32 operands to bf16 at default precision; allow
    # for that while still catching algorithmic errors (which would be O(1)).
    assert jnp.allclose(out, ref, atol=2e-2, rtol=2e-2), (
        "max |diff| = %f" % float(jnp.max(jnp.abs(out - ref))))

    print("KERNEL_OK")
</pallas_src>

<mosaic_0001>
module attributes {stable_mosaic.version = 11 : i64} {
  func.func @_conv1d_glu_kernel(%arg0: i32, %arg1: i32, %arg2: memref<1x16x4xf32, #tpu.memory_space<vmem>>, %arg3: memref<4x4xf32, #tpu.memory_space<vmem>>, %arg4: memref<4x4xf32, #tpu.memory_space<vmem>>, %arg5: memref<6x4xf32, #tpu.memory_space<vmem>>, %arg6: memref<4x4xf32, #tpu.memory_space<vmem>>, %arg7: memref<1x1x4xf32, #tpu.memory_space<vmem>>, %arg8: memref<1x16x4xf32, #tpu.memory_space<vmem>>) attributes {dimension_semantics = [#tpu.dimension_semantics<parallel>, #tpu.dimension_semantics<parallel>], iteration_bounds = array<i64: 2, 1>, scalar_prefetch = 0 : i64, scratch_operands = 0 : i64, tpu.core_type = #tpu.core_type<tc>, window_params = [{transform_indices = @transform_0, window_bounds = array<i64: 1, 16, 4>}, {transform_indices = @transform_1, window_bounds = array<i64: 4, 4>}, {transform_indices = @transform_2, window_bounds = array<i64: 4, 4>}, {transform_indices = @transform_3, window_bounds = array<i64: 6, 4>}, {transform_indices = @transform_4, window_bounds = array<i64: 4, 4>}, {transform_indices = @transform_5, window_bounds = array<i64: 1, 1, 4>}, {transform_indices = @transform_6, window_bounds = array<i64: 1, 16, 4>}]} {
    %c0 = arith.constant 0 : index
    %c0_0 = arith.constant 0 : index
    %c0_1 = arith.constant 0 : index
    %0 = vector.load %arg2[%c0, %c0_0, %c0_1] : memref<1x16x4xf32, #tpu.memory_space<vmem>>, vector<1x16x4xf32>
    %1 = vector.shape_cast %0 : vector<1x16x4xf32> to vector<16x4xf32>
    %c0_2 = arith.constant 0 : index
    %c0_3 = arith.constant 0 : index
    %2 = vector.load %arg3[%c0_2, %c0_3] : memref<4x4xf32, #tpu.memory_space<vmem>>, vector<4x4xf32>
    %cst = arith.constant dense<0.000000e+00> : vector<16x4xf32>
    %3 = tpu.matmul %1, %2, %cst {dimension_numbers = #tpu.dot_dimension_numbers<[1], [0], [0], [1], [0, 0, 1, 1], [], []>} : vector<16x4xf32>, vector<4x4xf32>, vector<16x4xf32> -> vector<16x4xf32>
    %c0_4 = arith.constant 0 : index
    %c0_5 = arith.constant 0 : index
    %4 = vector.load %arg6[%c0_4, %c0_5] : memref<4x4xf32, #tpu.memory_space<vmem>>, vector<1x4xf32>
    %5 = vector.broadcast %4 : vector<1x4xf32> to vector<16x4xf32>
    %6 = arith.addf %3, %5 : vector<16x4xf32>
    %c0_6 = arith.constant 0 : index
    %c0_7 = arith.constant 0 : index
    %7 = vector.load %arg4[%c0_6, %c0_7] : memref<4x4xf32, #tpu.memory_space<vmem>>, vector<4x4xf32>
    %cst_8 = arith.constant dense<0.000000e+00> : vector<16x4xf32>
    %8 = tpu.matmul %1, %7, %cst_8 {dimension_numbers = #tpu.dot_dimension_numbers<[1], [0], [0], [1], [0, 0, 1, 1], [], []>} : vector<16x4xf32>, vector<4x4xf32>, vector<16x4xf32> -> vector<16x4xf32>
    %c1 = arith.constant 1 : index
    %c0_9 = arith.constant 0 : index
    %9 = vector.load %arg6[%c1, %c0_9] : memref<4x4xf32, #tpu.memory_space<vmem>>, vector<1x4xf32>
    %10 = vector.broadcast %9 : vector<1x4xf32> to vector<16x4xf32>
    %11 = arith.addf %8, %10 : vector<16x4xf32>
    %12 = tpu.iota {dimensions = array<i32: 0>} : vector<16x4xi32>
    %c0_10 = arith.constant 0 : index
    %c0_11 = arith.constant 0 : index
    %13 = vector.load %arg5[%c0_10, %c0_11] : memref<6x4xf32, #tpu.memory_space<vmem>>, vector<6x4xf32>
    %c2 = arith.constant 2 : index
    %c0_12 = arith.constant 0 : index
    %14 = vector.load %arg6[%c2, %c0_12] : memref<4x4xf32, #tpu.memory_space<vmem>>, vector<1x4xf32>
    %15 = vector.extract_strided_slice %13 {offsets = [0, 0], sizes = [1, 4], strides = [1, 1]} : vector<6x4xf32> to vector<1x4xf32>
    %c1_i32 = arith.constant 1 : i32
    %16 = tpu.dynamic_rotate %6 by %c1_i32 dim 0 : vector<16x4xf32>, i32 -> vector<16x4xf32>
    %c1_i32_13 = arith.constant 1 : i32
    %17 = vector.broadcast %c1_i32_13 : i32 to vector<16x4xi32>
    %18 = arith.cmpi sge, %12, %17 : vector<16x4xi32>
    %c17_i32 = arith.constant 17 : i32
    %19 = vector.broadcast %c17_i32 : i32 to vector<16x4xi32>
    %20 = arith.cmpi slt, %12, %19 : vector<16x4xi32>
    %21 = arith.andi %18, %20 : vector<16x4xi1>
    %cst_14 = arith.constant 0.000000e+00 : f32
    %22 = vector.broadcast %cst_14 : f32 to vector<16x4xf32>
    %23 = arith.select %21, %16, %22 : vector<16x4xi1>, vector<16x4xf32>
    %24 = vector.broadcast %15 : vector<1x4xf32> to vector<16x4xf32>
    %25 = arith.mulf %23, %24 : vector<16x4xf32>
    %26 = vector.broadcast %14 : vector<1x4xf32> to vector<16x4xf32>
    %27 = arith.addf %26, %25 : vector<16x4xf32>
    %28 = vector.extract_strided_slice %13 {offsets = [1, 0], sizes = [1, 4], strides = [1, 1]} : vector<6x4xf32> to vector<1x4xf32>
    %29 = vector.broadcast %28 : vector<1x4xf32> to vector<16x4xf32>
    %30 = arith.mulf %6, %29 : vector<16x4xf32>
    %31 = arith.addf %27, %30 : vector<16x4xf32>
    %32 = vector.extract_strided_slice %13 {offsets = [2, 0], sizes = [1, 4], strides = [1, 1]} : vector<6x4xf32> to vector<1x4xf32>
    %c15_i32 = arith.constant 15 : i32
    %33 = tpu.dynamic_rotate %6 by %c15_i32 dim 0 : vector<16x4xf32>, i32 -> vector<16x4xf32>
    %c-1_i32 = arith.constant -1 : i32
    %34 = vector.broadcast %c-1_i32 : i32 to vector<16x4xi32>
    %35 = arith.cmpi sge, %12, %34 : vector<16x4xi32>
    %c15_i32_15 = arith.constant 15 : i32
    %36 = vector.broadcast %c15_i32_15 : i32 to vector<16x4xi32>
    %37 = arith.cmpi slt, %12, %36 : vector<16x4xi32>
    %38 = arith.andi %35, %37 : vector<16x4xi1>
    %cst_16 = arith.constant 0.000000e+00 : f32
    %39 = vector.broadcast %cst_16 : f32 to vector<16x4xf32>
    %40 = arith.select %38, %33, %39 : vector<16x4xi1>, vector<16x4xf32>
    %41 = vector.broadcast %32 : vector<1x4xf32> to vector<16x4xf32>
    %42 = arith.mulf %40, %41 : vector<16x4xf32>
    %43 = arith.addf %31, %42 : vector<16x4xf32>
    %c3 = arith.constant 3 : index
    %c0_17 = arith.constant 0 : index
    %44 = vector.load %arg6[%c3, %c0_17] : memref<4x4xf32, #tpu.memory_space<vmem>>, vector<1x4xf32>
    %45 = vector.extract_strided_slice %13 {offsets = [3, 0], sizes = [1, 4], strides = [1, 1]} : vector<6x4xf32> to vector<1x4xf32>
    %c1_i32_18 = arith.constant 1 : i32
    %46 = tpu.dynamic_rotate %11 by %c1_i32_18 dim 0 : vector<16x4xf32>, i32 -> vector<16x4xf32>
    %c1_i32_19 = arith.constant 1 : i32
    %47 = vector.broadcast %c1_i32_19 : i32 to vector<16x4xi32>
    %48 = arith.cmpi sge, %12, %47 : vector<16x4xi32>
    %c17_i32_20 = arith.constant 17 : i32
    %49 = vector.broadcast %c17_i32_20 : i32 to vector<16x4xi32>
    %50 = arith.cmpi slt, %12, %49 : vector<16x4xi32>
    %51 = arith.andi %48, %50 : vector<16x4xi1>
    %cst_21 = arith.constant 0.000000e+00 : f32
    %52 = vector.broadcast %cst_21 : f32 to vector<16x4xf32>
    %53 = arith.select %51, %46, %52 : vector<16x4xi1>, vector<16x4xf32>
    %54 = vector.broadcast %45 : vector<1x4xf32> to vector<16x4xf32>
    %55 = arith.mulf %53, %54 : vector<16x4xf32>
    %56 = vector.broadcast %44 : vector<1x4xf32> to vector<16x4xf32>
    %57 = arith.addf %56, %55 : vector<16x4xf32>
    %58 = vector.extract_strided_slice %13 {offsets = [4, 0], sizes = [1, 4], strides = [1, 1]} : vector<6x4xf32> to vector<1x4xf32>
    %59 = vector.broadcast %58 : vector<1x4xf32> to vector<16x4xf32>
    %60 = arith.mulf %11, %59 : vector<16x4xf32>
    %61 = arith.addf %57, %60 : vector<16x4xf32>
    %62 = vector.extract_strided_slice %13 {offsets = [5, 0], sizes = [1, 4], strides = [1, 1]} : vector<6x4xf32> to vector<1x4xf32>
    %c15_i32_22 = arith.constant 15 : i32
    %63 = tpu.dynamic_rotate %11 by %c15_i32_22 dim 0 : vector<16x4xf32>, i32 -> vector<16x4xf32>
    %c-1_i32_23 = arith.constant -1 : i32
    %64 = vector.broadcast %c-1_i32_23 : i32 to vector<16x4xi32>
    %65 = arith.cmpi sge, %12, %64 : vector<16x4xi32>
    %c15_i32_24 = arith.constant 15 : i32
    %66 = vector.broadcast %c15_i32_24 : i32 to vector<16x4xi32>
    %67 = arith.cmpi slt, %12, %66 : vector<16x4xi32>
    %68 = arith.andi %65, %67 : vector<16x4xi1>
    %cst_25 = arith.constant 0.000000e+00 : f32
    %69 = vector.broadcast %cst_25 : f32 to vector<16x4xf32>
    %70 = arith.select %68, %63, %69 : vector<16x4xi1>, vector<16x4xf32>
    %71 = vector.broadcast %62 : vector<1x4xf32> to vector<16x4xf32>
    %72 = arith.mulf %70, %71 : vector<16x4xf32>
    %73 = arith.addf %61, %72 : vector<16x4xf32>
    %c0_26 = arith.constant 0 : index
    %c0_27 = arith.constant 0 : index
    %c0_28 = arith.constant 0 : index
    %74 = vector.load %arg7[%c0_26, %c0_27, %c0_28] : memref<1x1x4xf32, #tpu.memory_space<vmem>>, vector<1x1x4xf32>
    %75 = vector.shape_cast %74 : vector<1x1x4xf32> to vector<1x4xf32>
    %cst_29 = arith.constant 0.000000e+00 : f32
    %76 = vector.broadcast %cst_29 : f32 to vector<16x4xf32>
    %77 = arith.subf %76, %73 : vector<16x4xf32>
    %78 = math.exp %77 : vector<16x4xf32>
    %cst_30 = arith.constant 1.000000e+00 : f32
    %79 = vector.broadcast %cst_30 : f32 to vector<16x4xf32>
    %80 = arith.addf %79, %78 : vector<16x4xf32>
    %cst_31 = arith.constant 1.000000e+00 : f32
    %81 = vector.broadcast %cst_31 : f32 to vector<16x4xf32>
    %82 = arith.divf %81, %80 : vector<16x4xf32>
    %83 = vector.broadcast %75 : vector<1x4xf32> to vector<16x4xf32>
    %84 = arith.addf %43, %83 : vector<16x4xf32>
    %85 = arith.mulf %84, %82 : vector<16x4xf32>
    %86 = arith.addf %85, %1 : vector<16x4xf32>
    %cst_32 = arith.constant 0.707106769 : f32
    %87 = vector.broadcast %cst_32 : f32 to vector<16x4xf32>
    %88 = arith.mulf %86, %87 : vector<16x4xf32>
    %c0_33 = arith.constant 0 : index
    %c0_34 = arith.constant 0 : index
    %c0_35 = arith.constant 0 : index
    %89 = vector.load %arg8[%c0_33, %c0_34, %c0_35] : memref<1x16x4xf32, #tpu.memory_space<vmem>>, vector<1x16x4xf32>
    %90 = vector.shape_cast %89 : vector<1x16x4xf32> to vector<16x4xf32>
    %91 = vector.shape_cast %88 : vector<16x4xf32> to vector<1x16x4xf32>
    tpu.vector_store %arg8[%c0_33, %c0_34, %c0_35], %91 {strides = array<i32>} : memref<1x16x4xf32, #tpu.memory_space<vmem>>, vector<1x16x4xf32>,
    return
  }
  func.func @transform_0(%arg0: i32, %arg1: i32) -> (i32, i32, i32) {
    %c0_i32 = arith.constant 0 : i32
    %c0_i32_0 = arith.constant 0 : i32
    %c0_i32_1 = arith.constant 0 : i32
    return %arg0, %c0_i32, %c0_i32_0 : i32, i32, i32
  }
  func.func @transform_1(%arg0: i32, %arg1: i32) -> (i32, i32) {
    %c0_i32 = arith.constant 0 : i32
    %c0_i32_0 = arith.constant 0 : i32
    return %c0_i32, %arg1 : i32, i32
  }
  func.func @transform_2(%arg0: i32, %arg1: i32) -> (i32, i32) {
    %c0_i32 = arith.constant 0 : i32
    %c0_i32_0 = arith.constant 0 : i32
    return %c0_i32, %arg1 : i32, i32
  }
  func.func @transform_3(%arg0: i32, %arg1: i32) -> (i32, i32) {
    %c0_i32 = arith.constant 0 : i32
    %c0_i32_0 = arith.constant 0 : i32
    return %c0_i32, %arg1 : i32, i32
  }
  func.func @transform_4(%arg0: i32, %arg1: i32) -> (i32, i32) {
    %c0_i32 = arith.constant 0 : i32
    %c0_i32_0 = arith.constant 0 : i32
    return %c0_i32, %arg1 : i32, i32
  }
  func.func @transform_5(%arg0: i32, %arg1: i32) -> (i32, i32, i32) {
    %c0_i32 = arith.constant 0 : i32
    %c0_i32_0 = arith.constant 0 : i32
    return %arg0, %c0_i32, %arg1 : i32, i32, i32
  }
  func.func @transform_6(%arg0: i32, %arg1: i32) -> (i32, i32, i32) {
    %c0_i32 = arith.constant 0 : i32
    %c0_i32_0 = arith.constant 0 : i32
    return %arg0, %c0_i32, %arg1 : i32, i32, i32
  }
}

</mosaic_0001>

<llo_original>
// kernel: tpu_custom_call.1
$region0: #{tpu_custom_call.1}
  #allocation0 [shape = 'u32[]', space=smem, size = 0x4, offset = 0x4, fixed_abs, tag = 'smem constant byte address 0x4 - core index']
  #allocation1 [shape = 'u32[72,128]{1,0:T(1,128)}', space=vmem, size = 0x9000, scoped, tag = 'internal scratch']
  %s0 = inlined_call_operand.vmem [shape: f32[2,16,4], index: 0, kind: input, shape index: {}]
  %s1 = inlined_call_operand.vmem [shape: f32[4,4], index: 1, kind: input, shape index: {}]
  %s2 = inlined_call_operand.vmem [shape: f32[4,4], index: 2, kind: input, shape index: {}]
  %s3 = inlined_call_operand.vmem [shape: f32[6,4], index: 3, kind: input, shape index: {}]
  %s4 = inlined_call_operand.vmem [shape: f32[4,4], index: 4, kind: input, shape index: {}]
  %s5 = inlined_call_operand.vmem [shape: f32[2,1,4], index: 5, kind: input, shape index: {}]
  %s6 = inlined_call_operand.vmem [shape: f32[2,16,4], index: 6, kind: output, shape index: {}]
  %s7 = sld [smem:[#allocation0]]
  $region57: #{tpu_custom_call.1} parent=0
    _
  %s9 = ssub.s32 1, %s7
  %s10 = scalar_select 0, %s9, %s7
  loop: start=0, step=1, limit=4
  $region2: #{tpu_custom_call.1} parent=0 // loop_pre_header
    _
  $region3: #{tpu_custom_call.1} parent=0 // loop_header
    %s12 = sphi 0, %s16
    %p13 = scmp.ge.s32.totalorder %s12, 4
    %s19 = sphi 0, %s31
    %s20 = sphi 0, %s27
    %s21 = sphi 0, %s19
    %s22 = sphi 0, %s20
    %s23 = sphi 0, %s21
    %s24 = sphi 0, %s22
    %s34 = sphi 0, %s36
    %s37 = sphi 0, %s34
    %s38 = sphi 0, %s37
    %s54 = sphi 0, %s38
    %s60 = sphi 0, %s62
    %s63 = sphi 0, %s60
    %s64 = sphi 0, %s63
    %s80 = sphi 0, %s64
    %s86 = sphi 0, %s88
    %s89 = sphi 0, %s86
    %s90 = sphi 0, %s89
    %s106 = sphi 0, %s90
    %s112 = sphi 0, %s114
    %s115 = sphi 0, %s112
    %s116 = sphi 0, %s115
    %s132 = sphi 0, %s116
    %s138 = sphi 0, %s140
    %s141 = sphi 0, %s138
    %s142 = sphi 0, %s141
    %s158 = sphi 0, %s142
    %s166 = sphi 0, %s168
    %s169 = sphi 0, %s166
    %s170 = sphi 0, %s169
    %s186 = sphi 0, %s170
    %s194 = sphi 0, %s196
    %s197 = sphi 0, %s194
    %s198 = sphi 0, %s197
    %s214 = sphi 0, %s198
  $region4: #{tpu_custom_call.1} parent=0 // loop_header_branch
    %15 = sbr.rel (%p13) target = $region8
  $region5: #{tpu_custom_call.1} parent=0 // loop_body
    %s17 = ssub.s32 %s12, 1
    %s18 = ssub.s32 %s12, 2
    %s25 = sadd.s32 1, %s20
    %p26 = scmp.ge.s32.totalorder %s25, 1
    %s27 = scalar_select %p26, 0, %s25
    %s28 = sadd.s32 1, %s19
    %s29 = scalar_select %p26, %s28, %s19
    %p30 = scmp.ge.s32.totalorder %s29, 2
    %s31 = scalar_select %p30, 0, %s29
    %s32 = ssub.s32 %s19, %s31
    %p33 = scmp.eq.s32.totalorder %s32, 0
    %s35 = sadd.s32 %s34, 1
    %s36 = scalar_select %p33, %s34, %s35
    %p39 = pneg %p33
    %p40 = scmp.eq.s32.totalorder %s12, 1
    %p41 = por %p39, %p40
    %p42 = scmp.ne.s32.totalorder %s34, %s37
    %p43 = scmp.eq.s32.totalorder %s12, 0
    %p44 = por %p42, %p43
    %p45 = scmp.ne.s32.totalorder %s34, %s37
    %p46 = scmp.eq.s32.totalorder %s17, 1
    %p47 = por %p45, %p46
    %p48 = scmp.ne.s32.totalorder %s37, %s38
    %p49 = scmp.eq.s32.totalorder %s17, 0
    %p50 = por %p48, %p49
    %p51 = scmp.ne.s32.totalorder %s37, %s38
    %p52 = scmp.eq.s32.totalorder %s18, 1
    %p53 = por %p51, %p52
    %p55 = scmp.ne.s32.totalorder %s38, %s54
    %p56 = scmp.eq.s32.totalorder %s18, 0
    %p57 = por %p55, %p56
    %s58 = ssub.s32 %s20, %s27
    %p59 = scmp.eq.s32.totalorder %s58, 0
    %s61 = sadd.s32 %s60, 1
    %s62 = scalar_select %p59, %s60, %s61
    %p65 = pneg %p59
    %p66 = scmp.eq.s32.totalorder %s12, 1
    %p67 = por %p65, %p66
    %p68 = scmp.ne.s32.totalorder %s60, %s63
    %p69 = scmp.eq.s32.totalorder %s12, 0
    %p70 = por %p68, %p69
    %p71 = scmp.ne.s32.totalorder %s60, %s63
    %p72 = scmp.eq.s32.totalorder %s17, 1
    %p73 = por %p71, %p72
    %p74 = scmp.ne.s32.totalorder %s63, %s64
    %p75 = scmp.eq.s32.totalorder %s17, 0
    %p76 = por %p74, %p75
    %p77 = scmp.ne.s32.totalorder %s63, %s64
    %p78 = scmp.eq.s32.totalorder %s18, 1
    %p79 = por %p77, %p78
    %p81 = scmp.ne.s32.totalorder %s64, %s80
    %p82 = scmp.eq.s32.totalorder %s18, 0
    %p83 = por %p81, %p82
    %s84 = ssub.s32 %s20, %s27
    %p85 = scmp.eq.s32.totalorder %s84, 0
    %s87 = sadd.s32 %s86, 1
    %s88 = scalar_select %p85, %s86, %s87
    %p91 = pneg %p85
    %p92 = scmp.eq.s32.totalorder %s12, 1
    %p93 = por %p91, %p92
    %p94 = scmp.ne.s32.totalorder %s86, %s89
    %p95 = scmp.eq.s32.totalorder %s12, 0
    %p96 = por %p94, %p95
    %p97 = scmp.ne.s32.totalorder %s86, %s89
    %p98 = scmp.eq.s32.totalorder %s17, 1
    %p99 = por %p97, %p98
    %p100 = scmp.ne.s32.totalorder %s89, %s90
    %p101 = scmp.eq.s32.totalorder %s17, 0
    %p102 = por %p100, %p101
    %p103 = scmp.ne.s32.totalorder %s89, %s90
    %p104 = scmp.eq.s32.totalorder %s18, 1
    %p105 = por %p103, %p104
    %p107 = scmp.ne.s32.totalorder %s90, %s106
    %p108 = scmp.eq.s32.totalorder %s18, 0
    %p109 = por %p107, %p108
    %s110 = ssub.s32 %s20, %s27
    %p111 = scmp.eq.s32.totalorder %s110, 0
    %s113 = sadd.s32 %s112, 1
    %s114 = scalar_select %p111, %s112, %s113
    %p117 = pneg %p111
    %p118 = scmp.eq.s32.totalorder %s12, 1
    %p119 = por %p117, %p118
    %p120 = scmp.ne.s32.totalorder %s112, %s115
    %p121 = scmp.eq.s32.totalorder %s12, 0
    %p122 = por %p120, %p121
    %p123 = scmp.ne.s32.totalorder %s112, %s115
    %p124 = scmp.eq.s32.totalorder %s17, 1
    %p125 = por %p123, %p124
    %p126 = scmp.ne.s32.totalorder %s115, %s116
    %p127 = scmp.eq.s32.totalorder %s17, 0
    %p128 = por %p126, %p127
    %p129 = scmp.ne.s32.totalorder %s115, %s116
    %p130 = scmp.eq.s32.totalorder %s18, 1
    %p131 = por %p129, %p130
    %p133 = scmp.ne.s32.totalorder %s116, %s132
    %p134 = scmp.eq.s32.totalorder %s18, 0
    %p135 = por %p133, %p134
    %s136 = ssub.s32 %s20, %s27
    %p137 = scmp.eq.s32.totalorder %s136, 0
    %s139 = sadd.s32 %s138, 1
    %s140 = scalar_select %p137, %s138, %s139
    %p143 = pneg %p137
    %p144 = scmp.eq.s32.totalorder %s12, 1
    %p145 = por %p143, %p144
    %p146 = scmp.ne.s32.totalorder %s138, %s141
    %p147 = scmp.eq.s32.totalorder %s12, 0
    %p148 = por %p146, %p147
    %p149 = scmp.ne.s32.totalorder %s138, %s141
    %p150 = scmp.eq.s32.totalorder %s17, 1
    %p151 = por %p149, %p150
    %p152 = scmp.ne.s32.totalorder %s141, %s142
    %p153 = scmp.eq.s32.totalorder %s17, 0
    %p154 = por %p152, %p153
    %p155 = scmp.ne.s32.totalorder %s141, %s142
    %p156 = scmp.eq.s32.totalorder %s18, 1
    %p157 = por %p155, %p156
    %p159 = scmp.ne.s32.totalorder %s142, %s158
    %p160 = scmp.eq.s32.totalorder %s18, 0
    %p161 = por %p159, %p160
    %s162 = ssub.s32 %s19, %s31
    %s163 = ssub.s32 %s20, %s27
    %s164 = sor.u32 %s162, %s163
    %p165 = scmp.eq.s32.totalorder %s164, 0
    %s167 = sadd.s32 %s166, 1
    %s168 = scalar_select %p165, %s166, %s167
    %p171 = pneg %p165
    %p172 = scmp.eq.s32.totalorder %s12, 1
    %p173 = por %p171, %p172
    %p174 = scmp.ne.s32.totalorder %s166, %s169
    %p175 = scmp.eq.s32.totalorder %s12, 0
    %p176 = por %p174, %p175
    %p177 = scmp.ne.s32.totalorder %s166, %s169
    %p178 = scmp.eq.s32.totalorder %s17, 1
    %p179 = por %p177, %p178
    %p180 = scmp.ne.s32.totalorder %s169, %s170
    %p181 = scmp.eq.s32.totalorder %s17, 0
    %p182 = por %p180, %p181
    %p183 = scmp.ne.s32.totalorder %s169, %s170
    %p184 = scmp.eq.s32.totalorder %s18, 1
    %p185 = por %p183, %p184
    %p187 = scmp.ne.s32.totalorder %s170, %s186
    %p188 = scmp.eq.s32.totalorder %s18, 0
    %p189 = por %p187, %p188
    %s190 = ssub.s32 %s19, %s31
    %s191 = ssub.s32 %s20, %s27
    %s192 = sor.u32 %s190, %s191
    %p193 = scmp.eq.s32.totalorder %s192, 0
    %s195 = sadd.s32 %s194, 1
    %s196 = scalar_select %p193, %s194, %s195
    %p199 = pneg %p193
    %p200 = scmp.eq.s32.totalorder %s12, 1
    %p201 = por %p199, %p200
    %p202 = scmp.ne.s32.totalorder %s194, %s197
    %p203 = scmp.eq.s32.totalorder %s12, 0
    %p204 = por %p202, %p203
    %p205 = scmp.ne.s32.totalorder %s194, %s197
    %p206 = scmp.eq.s32.totalorder %s17, 1
    %p207 = por %p205, %p206
    %p208 = scmp.ne.s32.totalorder %s197, %s198
    %p209 = scmp.eq.s32.totalorder %s17, 0
    %p210 = por %p208, %p209
    %p211 = scmp.ne.s32.totalorder %s197, %s198
    %p212 = scmp.eq.s32.totalorder %s18, 1
    %p213 = por %p211, %p212
    %p215 = scmp.ne.s32.totalorder %s198, %s214
    %p216 = scmp.eq.s32.totalorder %s18, 0
    %p217 = por %p215, %p216
    %p218 = scmp.le.s32.totalorder 1, %s12
    %p219 = scmp.lt.s32.totalorder %s12, 3
    %p220 = pnand %p218, %p219
    %p221 = pneg %p220
    // Predicated region
    $region9: #{tpu_custom_call.1} parent=5 // pred_check
      _
    $region10: #{tpu_custom_call.1} parent=5 // pred_check_branch
      %223 = sbr.rel (%p220) target = $region12
    $region11: #{tpu_custom_call.1} parent=5 // pred_region
      %s224 = ssub.s32 %s12, 1
      // Predicated region
      $region13: #{tpu_custom_call.1} parent=11 // pred_check
        %p225 = pneg %p76
      $region14: #{tpu_custom_call.1} parent=11 // pred_check_branch
        %227 = sbr.rel (%p225) target = $region16
      $region15: #{tpu_custom_call.1} parent=11 // pred_region
        %p228 = scmp.lt.s32.totalorder %s22, 0
        %s229 = scalar_select %p228, %s22, 0
        %s230 = smul.addr %s229, 4
        %s231 = scalar_lea.vmem %s1, %s230
      $region16: #{tpu_custom_call.1} parent=11 // pred_fallthru
        _
      // Predicated region
      $region17: #{tpu_custom_call.1} parent=11 // pred_check
        %p232 = pneg %p102
      $region18: #{tpu_custom_call.1} parent=11 // pred_check_branch
        %234 = sbr.rel (%p232) target = $region20
      $region19: #{tpu_custom_call.1} parent=11 // pred_region
        %p235 = scmp.lt.s32.totalorder %s22, 0
        %s236 = scalar_select %p235, %s22, 0
        %s237 = smul.addr %s236, 4
        %s238 = scalar_lea.vmem %s2, %s237
      $region20: #{tpu_custom_call.1} parent=11 // pred_fallthru
        _
      // Predicated region
      $region21: #{tpu_custom_call.1} parent=11 // pred_check
        %p239 = pneg %p128
      $region22: #{tpu_custom_call.1} parent=11 // pred_check_branch
        %241 = sbr.rel (%p239) target = $region24
      $region23: #{tpu_custom_call.1} parent=11 // pred_region
        %p242 = scmp.lt.s32.totalorder %s22, 0
        %s243 = scalar_select %p242, %s22, 0
        %s244 = smul.addr %s243, 8
        %s245 = scalar_lea.vmem %s3, %s244
      $region24: #{tpu_custom_call.1} parent=11 // pred_fallthru
        _
      // Predicated region
      $region25: #{tpu_custom_call.1} parent=11 // pred_check
        %p246 = pneg %p154
      $region26: #{tpu_custom_call.1} parent=11 // pred_check_branch
        %248 = sbr.rel (%p246) target = $region28
      $region27: #{tpu_custom_call.1} parent=11 // pred_region
        %p249 = scmp.lt.s32.totalorder %s22, 0
        %s250 = scalar_select %p249, %s22, 0
        %s251 = smul.addr %s250, 4
        %s252 = scalar_lea.vmem %s4, %s251
      $region28: #{tpu_custom_call.1} parent=11 // pred_fallthru
        _
    $region12: #{tpu_custom_call.1} parent=5 // pred_fallthru
      _
    %p253 = scmp.lt.s32.totalorder %s12, 2
    // Predicated region
    $region29: #{tpu_custom_call.1} parent=5 // pred_check
      %p254 = pneg %p253
    $region30: #{tpu_custom_call.1} parent=5 // pred_check_branch
      %256 = sbr.rel (%p254) target = $region32
    $region31: #{tpu_custom_call.1} parent=5 // pred_region
      // Predicated region
      $region33: #{tpu_custom_call.1} parent=31 // pred_check
        %p257 = pneg %p44
      $region34: #{tpu_custom_call.1} parent=31 // pred_check_branch
        %259 = sbr.rel (%p257) target = $region36
      $region35: #{tpu_custom_call.1} parent=31 // pred_region
        %p260 = scmp.lt.s32.totalorder %s19, 1
        %s261 = scalar_select %p260, %s19, 1
        %s262 = smul.addr %s261, 2
        %s263 = smul.addr %s262, 8
        %s264 = scalar_lea.vmem %s0, %s263
      $region36: #{tpu_custom_call.1} parent=31 // pred_fallthru
        _
      // Predicated region
      $region37: #{tpu_custom_call.1} parent=31 // pred_check
        %p265 = pneg %p176
      $region38: #{tpu_custom_call.1} parent=31 // pred_check_branch
        %267 = sbr.rel (%p265) target = $region40
      $region39: #{tpu_custom_call.1} parent=31 // pred_region
        %p268 = scmp.lt.s32.totalorder %s19, 1
        %s269 = scalar_select %p268, %s19, 1
        %p270 = scmp.lt.s32.totalorder %s20, 0
        %s271 = scalar_select %p270, %s20, 0
        %s272 = sadd.s32 %s271, %s269
        %s273 = scalar_lea.vmem %s5, %s272
      $region40: #{tpu_custom_call.1} parent=31 // pred_fallthru
        _
    $region32: #{tpu_custom_call.1} parent=5 // pred_fallthru
      _
    %p274 = scmp.le.s32.totalorder 1, %s12
    %p275 = scmp.lt.s32.totalorder %s12, 3
    %p276 = pnand %p274, %p275
    %p277 = pneg %p276
    // Predicated region
    $region41: #{tpu_custom_call.1} parent=5 // pred_check
      _
    $region42: #{tpu_custom_call.1} parent=5 // pred_check_branch
      %279 = sbr.rel (%p276) target = $region44
    $region43: #{tpu_custom_call.1} parent=5 // pred_region
      %s280 = ssub.s32 %s12, 1
      %p281 = scmp.lt.s32.totalorder %s21, 1
      %s282 = scalar_select %p281, %s21, 1
      %s283 = smul.addr %s282, 2
      %s284 = smul.addr %s283, 8
      %s285 = scalar_lea.vmem %s0, %s284
      %p286 = pneg %p50
      %p287 = pneg %p47
      %p288 = scmp.lt.s32.totalorder %s22, 0
      %s289 = scalar_select %p288, %s22, 0
      %s290 = smul.addr %s289, 4
      %s291 = scalar_lea.vmem %s1, %s290
      %p292 = pneg %p76
      %p293 = pneg %p73
      %p294 = scmp.lt.s32.totalorder %s22, 0
      %s295 = scalar_select %p294, %s22, 0
      %s296 = smul.addr %s295, 4
      %s297 = scalar_lea.vmem %s2, %s296
      %p298 = pneg %p102
      %p299 = pneg %p99
      %p300 = scmp.lt.s32.totalorder %s22, 0
      %s301 = scalar_select %p300, %s22, 0
      %s302 = smul.addr %s301, 8
      %s303 = scalar_lea.vmem %s3, %s302
      %p304 = pneg %p128
      %p305 = pneg %p125
      %p306 = scmp.lt.s32.totalorder %s22, 0
      %s307 = scalar_select %p306, %s22, 0
      %s308 = smul.addr %s307, 4
      %s309 = scalar_lea.vmem %s4, %s308
      %p310 = pneg %p154
      %p311 = pneg %p151
      %p312 = scmp.lt.s32.totalorder %s21, 1
      %s313 = scalar_select %p312, %s21, 1
      %p314 = scmp.lt.s32.totalorder %s22, 0
      %s315 = scalar_select %p314, %s22, 0
      %s316 = sadd.s32 %s315, %s313
      %s317 = scalar_lea.vmem %s5, %s316
      %p318 = pneg %p182
      %p319 = pneg %p179
      %p320 = pneg %p210
      %p321 = pneg %p207
      %p322 = scmp.lt.s32.totalorder %s21, 1
      %s323 = scalar_select %p322, %s21, 1
      %p324 = scmp.lt.s32.totalorder %s22, 0
      %s325 = scalar_select %p324, %s22, 0
      %s326 = smul.addr %s323, 2
      %s327 = sadd.s32 %s325, %s326
      %s328 = smul.addr %s327, 8
      %s329 = scalar_lea.vmem %s6, %s328
      %p330 = scmp.lt.s32.totalorder %s21, 1
      %s331 = scalar_select %p330, %s21, 1
      %s332 = smul.addr %s331, 2
      %s333 = smul.addr %s332, 8
      %s334 = scalar_lea.vmem %s0, %s333
      %p335 = scmp.lt.s32.totalorder %s22, 0
      %s336 = scalar_select %p335, %s22, 0
      %s337 = smul.addr %s336, 4
      %s338 = scalar_lea.vmem %s1, %s337
      %p339 = scmp.lt.s32.totalorder %s22, 0
      %s340 = scalar_select %p339, %s22, 0
      %s341 = smul.addr %s340, 4
      %s342 = scalar_lea.vmem %s2, %s341
      %p343 = scmp.lt.s32.totalorder %s22, 0
      %s344 = scalar_select %p343, %s22, 0
      %s345 = smul.addr %s344, 8
      %s346 = scalar_lea.vmem %s3, %s345
      %p347 = scmp.lt.s32.totalorder %s22, 0
      %s348 = scalar_select %p347, %s22, 0
      %s349 = smul.addr %s348, 4
      %s350 = scalar_lea.vmem %s4, %s349
      %p351 = scmp.lt.s32.totalorder %s21, 1
      %s352 = scalar_select %p351, %s21, 1
      %p353 = scmp.lt.s32.totalorder %s22, 0
      %s354 = scalar_select %p353, %s22, 0
      %s355 = sadd.s32 %s354, %s352
      %s356 = scalar_lea.vmem %s5, %s355
      %p357 = scmp.lt.s32.totalorder %s21, 1
      %s358 = scalar_select %p357, %s21, 1
      %p359 = scmp.lt.s32.totalorder %s22, 0
      %s360 = scalar_select %p359, %s22, 0
      %s361 = smul.addr %s358, 2
      %s362 = sadd.s32 %s360, %s361
      %s363 = smul.addr %s362, 8
      %s364 = scalar_lea.vmem %s6, %s363
      %v365 = vld [vmem:[%s334] sm:$0xff]
      %v366 = vld [vmem:[%s334 + $0x8] sm:$0xff]
      %v367 = vld [vmem:[%s338] sm:$0xf]
      %v368 = vld [vmem:[%s350] sm:$0x1]
      %v369 = vperm.slane %v368, 0
      %vm370 = vcmask 31744
      %v372 = vsel %vm370, %v365, 0
      %v375 = vsel %vm370, %v366, 0
      %vm377 = vcmask 1043456
      %v379 = vsel %vm377, %v367, 0
      %381 = vmatpush.msra.mxu0 0.0
      %382 = vmatpush.msra.mxu0 0.0
      %383 = vmatpush.msra.mxu0 0.0
      %384 = vmatpush.msra.mxu0 0.0
      %385 = vmatpush.msra.mxu0 0.0
      %386 = vmatpush.msra.mxu0 0.0
      %387 = vmatpush.msra.mxu0 0.0
      %388 = vmatpush.msra.mxu0 0.0
      %389 = vmatpush.msra.mxu0 0.0
      %390 = vmatpush.msra.mxu0 0.0
      %391 = vmatpush.msra.mxu0 0.0
      %392 = vmatpush.msra.mxu0 0.0
      %393 = vmatpush.msra.mxu0 0.0
      %394 = vmatpush.msra.mxu0 0.0
      %395 = vmatpush.msra.mxu0 0.0
      %396 = vmatpush.msra.mxu0 %v379
      %397 = vmatmul.f32.gmra.mxu0 %v372
      %v398 = vpop.f32.mrf.mxu0
      %v399 = vadd.f32 %v369, %v398
      %400 = vmatmul.f32.gmra.mxu0 %v375
      %v401 = vpop.f32.mrf.mxu0
      %v402 = vadd.f32 %v369, %v401
      %403 = vdwg.mxu0
      %v404 = vld [vmem:[%s342] sm:$0xf]
      %v405 = vld [vmem:[%s350 + $0x1] sm:$0x1]
      %v406 = vperm.slane %v405, 0
      %v408 = vsel %vm377, %v404, 0
      %410 = vmatpush.msra.mxu0 0.0
      %411 = vmatpush.msra.mxu0 0.0
      %412 = vmatpush.msra.mxu0 0.0
      %413 = vmatpush.msra.mxu0 0.0
      %414 = vmatpush.msra.mxu0 0.0
      %415 = vmatpush.msra.mxu0 0.0
      %416 = vmatpush.msra.mxu0 0.0
      %417 = vmatpush.msra.mxu0 0.0
      %418 = vmatpush.msra.mxu0 0.0
      %419 = vmatpush.msra.mxu0 0.0
      %420 = vmatpush.msra.mxu0 0.0
      %421 = vmatpush.msra.mxu0 0.0
      %422 = vmatpush.msra.mxu0 0.0
      %423 = vmatpush.msra.mxu0 0.0
      %424 = vmatpush.msra.mxu0 0.0
      %425 = vmatpush.msra.mxu0 %v408
      %426 = vmatmul.f32.gmra.mxu0 %v372
      %v427 = vpop.f32.mrf.mxu0
      %v428 = vadd.f32 %v406, %v427
      %429 = vmatmul.f32.gmra.mxu0 %v375
      %v430 = vpop.f32.mrf.mxu0
      %v431 = vadd.f32 %v406, %v430
      %432 = vdwg.mxu0
      %v433 = vlaneseq
      %v434 = vshrl.u32 %v433, 7
      %v435 = vadd.s32 %v434, 8
      %v436 = vld [vmem:[%s346] sm:$0x3f]
      %v437 = vld [vmem:[%s350 + $0x2] sm:$0x1]
      %v438 = vrot.slane %v399, 7
      %v439 = vrot.slane %v402, 7
      %vm440 = vcmp.lt.s32.totalorder %v434, 1
      %v441 = vsel %vm440, %v438, %v439
      %v442 = vsel %vm440, %v439, %v438
      %vm443 = vcmp.ge.s32.totalorder %v434, 1
      %vm444 = vcmp.ge.s32.totalorder %v435, 1
      %vm445 = vcmp.lt.s32.totalorder %v434, 17
      %vm446 = vcmp.lt.s32.totalorder %v435, 17
      %vm447 = vmand %vm443, %vm445
      %vm448 = vmand %vm444, %vm446
      %v449 = vsel %vm447, %v442, 0.0
      %v450 = vsel %vm448, %v441, 0.0
      %v451 = vperm.slane %v436, 0
      %v452 = vmul.f32 %v449, %v451
      %v453 = vmul.f32 %v450, %v451
      %v454 = vperm.slane %v437, 0
      %v455 = vadd.f32 %v454, %v452
      %v456 = vadd.f32 %v454, %v453
      %v457 = vperm.slane %v436, 1
      %v458 = vmul.f32 %v399, %v457
      %v459 = vmul.f32 %v402, %v457
      %v460 = vadd.f32 %v455, %v458
      %v461 = vadd.f32 %v456, %v459
      %v462 = vrot.slane %v399, 1
      %v463 = vrot.slane %v402, 1
      %vm464 = vcmp.lt.s32.totalorder %v434, 7
      %v465 = vsel %vm464, %v462, %v463
      %v466 = vsel %vm464, %v463, %v462
      %vm467 = vcmp.ge.s32.totalorder %v434, 4294967295
      %vm468 = vcmp.ge.s32.totalorder %v435, 4294967295
      %vm469 = vcmp.lt.s32.totalorder %v434, 15
      %vm470 = vcmp.lt.s32.totalorder %v435, 15
      %vm471 = vmand %vm467, %vm469
      %vm472 = vmand %vm468, %vm470
      %v473 = vsel %vm471, %v465, 0.0
      %v474 = vsel %vm472, %v466, 0.0
      %v475 = vperm.slane %v436, 2
      %v476 = vmul.f32 %v473, %v475
      %v477 = vmul.f32 %v474, %v475
      %v478 = vadd.f32 %v460, %v476
      %v479 = vadd.f32 %v461, %v477
      %v480 = vld [vmem:[%s350 + $0x3] sm:$0x1]
      %v481 = vrot.slane %v428, 7
      %v482 = vrot.slane %v431, 7
      %v483 = vsel %vm440, %v481, %v482
      %v484 = vsel %vm440, %v482, %v481
      %v485 = vsel %vm447, %v484, 0.0
      %v486 = vsel %vm448, %v483, 0.0
      %v487 = vperm.slane %v436, 3
      %v488 = vmul.f32 %v485, %v487
      %v489 = vmul.f32 %v486, %v487
      %v490 = vperm.slane %v480, 0
      %v491 = vadd.f32 %v490, %v488
      %v492 = vadd.f32 %v490, %v489
      %v493 = vperm.slane %v436, 4
      %v494 = vmul.f32 %v428, %v493
      %v495 = vmul.f32 %v431, %v493
      %v496 = vadd.f32 %v491, %v494
      %v497 = vadd.f32 %v492, %v495
      %v498 = vrot.slane %v428, 1
      %v499 = vrot.slane %v431, 1
      %v500 = vsel %vm464, %v498, %v499
      %v501 = vsel %vm464, %v499, %v498
      %v502 = vsel %vm471, %v500, 0.0
      %v503 = vsel %vm472, %v501, 0.0
      %v504 = vperm.slane %v436, 5
      %v505 = vmul.f32 %v502, %v504
      %v506 = vmul.f32 %v503, %v504
      %v507 = vadd.f32 %v496, %v505
      %v508 = vadd.f32 %v497, %v506
      %v509 = vld [vmem:[%s356] sm:$0x1]
      %v510 = vsub.f32 0.0, %v507
      %v511 = vsub.f32 0.0, %v508
      %v512 = vmul.f32 %v510, 1.442695
      %v513 = vpow.pop %v512
      %v514 = vmul.f32 %v511, 1.442695
      %v515 = vpow.pop %v514
      %v516 = vadd.f32 %v513, 1.0
      %v517 = vadd.f32 %v515, 1.0
      %v518 = vrcp.pop %v516
      %v519 = vmul.f32 %v516, %v518
      %v520 = vsub.f32 1.0, %v519
      %v521 = vmul.f32 %v518, %v520
      %v522 = vadd.f32 %v518, %v521
      %vm523 = vweird.f32 %v516
      %vm524 = vweird.f32 %v518
      %vm525 = vmor %vm523, %vm524
      %v526 = vsel %vm525, %v518, %v522
      %v527 = vand.u32 2147483647, %v516
      %vm528 = vcmp.eq.f32.partialorder %v527, 8.507059e+37
      %v529 = vand.u32 %v516, 2147483648
      %v530 = vor.u32 1.1754944e-38, %v529
      %v531 = vsel %vm528, %v530, %v526
      %v532 = vmul.f32 1.0, %v531
      %v533 = vrcp.pop %v517
      %v534 = vmul.f32 %v517, %v533
      %v535 = vsub.f32 1.0, %v534
      %v536 = vmul.f32 %v533, %v535
      %v537 = vadd.f32 %v533, %v536
      %vm538 = vweird.f32 %v517
      %vm539 = vweird.f32 %v533
      %vm540 = vmor %vm538, %vm539
      %v541 = vsel %vm540, %v533, %v537
      %v542 = vand.u32 2147483647, %v517
      %vm543 = vcmp.eq.f32.partialorder %v542, 8.507059e+37
      %v544 = vand.u32 %v517, 2147483648
      %v545 = vor.u32 1.1754944e-38, %v544
      %v546 = vsel %vm543, %v545, %v541
      %v547 = vmul.f32 1.0, %v546
      %v549 = vperm.slane %v509, 0
      %v551 = vadd.f32 %v478, %v549
      %v552 = vadd.f32 %v479, %v549
      %v553 = vmul.f32 %v551, %v532
      %v554 = vmul.f32 %v552, %v547
      %v555 = vadd.f32 %v553, %v365
      %v556 = vadd.f32 %v554, %v366
      %v557 = vmul.f32 %v555, 0.70710677
      %v558 = vmul.f32 %v556, 0.70710677
      %559 = vst.msk [vmem:[%s364] sm:$0xff] %vm370, %v557
      %560 = vst.msk [vmem:[%s364 + $0x8] sm:$0xff] %vm370, %v558
      %p561 = scmp.lt.s32.totalorder %s21, 1
      %s562 = scalar_select %p561, %s21, 1
      %p563 = scmp.lt.s32.totalorder %s22, 0
      %s564 = scalar_select %p563, %s22, 0
      %s565 = smul.addr %s562, 2
      %s566 = sadd.s32 %s564, %s565
      %s567 = smul.addr %s566, 8
      %s568 = scalar_lea.vmem %s6, %s567
      // Predicated region
      $region45: #{tpu_custom_call.1} parent=43 // pred_check
        %p569 = pneg %p207
      $region46: #{tpu_custom_call.1} parent=43 // pred_check_branch
        %571 = sbr.rel (%p569) target = $region48
      $region47: #{tpu_custom_call.1} parent=43 // pred_region
        _
      $region48: #{tpu_custom_call.1} parent=43 // pred_fallthru
        _
    $region44: #{tpu_custom_call.1} parent=5 // pred_fallthru
      _
    %p572 = scmp.le.s32.totalorder 2, %s12
    // Predicated region
    $region49: #{tpu_custom_call.1} parent=5 // pred_check
      %p573 = pneg %p572
    $region50: #{tpu_custom_call.1} parent=5 // pred_check_branch
      %575 = sbr.rel (%p573) target = $region52
    $region51: #{tpu_custom_call.1} parent=5 // pred_region
      %s576 = ssub.s32 %s12, 2
      // Predicated region
      $region53: #{tpu_custom_call.1} parent=51 // pred_check
        %p577 = pneg %p213
      $region54: #{tpu_custom_call.1} parent=51 // pred_check_branch
        %579 = sbr.rel (%p577) target = $region56
      $region55: #{tpu_custom_call.1} parent=51 // pred_region
        %p580 = scmp.lt.s32.totalorder %s23, 1
        %s581 = scalar_select %p580, %s23, 1
        %p582 = scmp.lt.s32.totalorder %s24, 0
        %s583 = scalar_select %p582, %s24, 0
        %s584 = smul.addr %s581, 2
        %s585 = sadd.s32 %s583, %s584
        %s586 = smul.addr %s585, 8
        %s587 = scalar_lea.vmem %s6, %s586
      $region56: #{tpu_custom_call.1} parent=51 // pred_fallthru
        _
    $region52: #{tpu_custom_call.1} parent=5 // pred_fallthru
      _
  $region6: #{tpu_custom_call.1} parent=0 // loop_footer
    %s16 = sadd.s32 1, %s12
  $region7: #{tpu_custom_call.1} parent=0 // loop_footer_branch
    %11 = sbr.rel target = $region3
  $region8: #{tpu_custom_call.1} parent=0 // loop_exit
    _

</llo_original>
